<compile_context>
chip_gen: v7x
topology: tpu7x:2x2x1
jax: 0.10.0
libtpu: 0.0.40
codegen_flags: <defaults>
</compile_context>

<pallas_src>
import jax
import jax.numpy as jnp
import numpy as np
from jax.experimental import pallas as pl
from jax.experimental.pallas import tpu as pltpu

NUM_HEADS = 8                        # H
VOCAB_SIZE = 32                      # V
HEAD_DIM = VOCAB_SIZE // NUM_HEADS   # D = V / H


def _selection_matrix(num_heads, vocab_size):
    """S (V, H*V) with S[a, l*V + c] = 1 iff a == (c // H) * H + l.

    Then (W @ S)[r, l*V + c] = W[r, (c//H)*H + l], which is exactly the w-operand of the
    per-sample D-blockwise matmuls; the contraction over l is finished on the VPU.
    """
    h, vs = num_heads, vocab_size
    sel = np.zeros((vs, h * vs), np.float32)
    cols = np.arange(vs)
    for l in range(h):
        sel[(cols // h) * h + l, l * vs + cols] = 1.0
    return sel


def _mhsa_kernel(k_ref, q_ref, v_ref, wk_ref, wq_ref, wv_ref,
                 bk_ref, bq_ref, bv_ref, sel_ref, out_ref, *wts_refs):
    tb, nh, vs = out_ref.shape                # (TB, H, V)
    m = tb * nh
    inv_sqrt_h = 1.0 / (nh ** 0.5)

    # Stack all TB samples' rows: (TB, H, V) -> (TB*H, V) is layout-preserving (H=8 sublanes).
    k_in = k_ref[...].reshape(m, vs)
    q_in = q_ref[...].reshape(m, vs)
    v_in = v_ref[...].reshape(m, vs)

    # Projections: three MXU matmuls with M = TB*H stacked rows + broadcast bias adds.
    k = jnp.dot(k_in, wk_ref[...], preferred_element_type=jnp.float32) + bk_ref[...]
    q = jnp.dot(q_in, wq_ref[...], preferred_element_type=jnp.float32) + bq_ref[...]
    val = jnp.dot(v_in, wv_ref[...], preferred_element_type=jnp.float32) + bv_ref[...]

    # attention = split(q) * split(k) / sqrt(num_heads): elementwise in the (H, V) layout.
    scores = (q * k * inv_sqrt_h).reshape(tb, nh, vs)

    # torch.nn.Softmax() (implicit dim on the 4-D split tensor -> dim=1) == softmax over the
    # H rows of each sample, per column (sublane reduction within each sample's tile).
    mx = jnp.max(scores, axis=1, keepdims=True)
    e = jnp.exp(scores - mx)
    denom = jnp.sum(e, axis=1, keepdims=True)
    w3 = e * pl.reciprocal(denom, approx=True)          # divide -> EUP slot

    if wts_refs:                                        # static: weights output is optional
        wts_refs[0][...] = w3

    # Stage 2: per sample, D independent HxH matmuls O[d] = W[:, dH:(d+1)H] @ V[:, dH:(d+1)H].
    # One lane-dense MXU matmul against the resident selection matrix gives
    #   wsel[r, l*V + c] = W[r, (c//H)*H + l]
    # and the contraction over l (= H unrolled terms) finishes on the VPU with a
    # sublane-broadcast of value row l.  No per-sample loop, no in-kernel mask/iota.
    wsel = jnp.dot(w3.reshape(m, vs), sel_ref[...],
                   preferred_element_type=jnp.float32).reshape(tb, nh, nh * vs)
    v3 = val.reshape(tb, nh, vs)
    acc = wsel[:, :, 0:vs] * v3[:, 0:1, :]
    for l in range(1, nh):
        acc = acc + wsel[:, :, l * vs:(l + 1) * vs] * v3[:, l:l + 1, :]
    out_ref[...] = acc


def multi_head_self_attention_batched(key, query, value, params, mask=None, *,
                                      block_size=128, return_weights=True):
    """Batched form: key/query/value are (B, H, V); one pallas_call, TB samples per grid step."""
    # TODO(synk): the reference mask branch calls undefined `tf.where` (and `if mask:` on a
    # tensor would raise), so only mask=None is supported.
    assert mask is None
    b, nh, vs = query.shape
    assert vs % nh == 0
    d = vs // nh
    wq, bq, wk, bk, wv, bv = params

    tb = int(max(1, min(block_size, b)))
    bp = ((b + tb - 1) // tb) * tb
    if bp != b:
        pad = ((0, bp - b), (0, 0), (0, 0))
        key, query, value = (jnp.pad(a, pad) for a in (key, query, value))

    # Grid-resident constants (index_map -> (0, 0)): transposed Linear weights, bias rows,
    # and the stage-2 selection matrix.
    wk_t, wq_t, wv_t = wk.T, wq.T, wv.T
    bk_r, bq_r, bv_r = (x.reshape(1, vs) for x in (bk, bq, bv))
    sel = jnp.asarray(_selection_matrix(nh, vs))

    data_spec = pl.BlockSpec((tb, nh, vs), lambda i: (i, 0, 0))
    out_spec = pl.BlockSpec((tb, nh, vs), lambda i: (i, 0, 0))

    def resident(shape):
        return pl.BlockSpec(shape, lambda i: (0, 0))

    if return_weights:
        out_shapes = (jax.ShapeDtypeStruct((bp, nh, vs), jnp.float32),
                      jax.ShapeDtypeStruct((bp, nh, vs), jnp.float32))
        out_specs = (out_spec, pl.BlockSpec((tb, nh, vs), lambda i: (i, 0, 0)))
    else:
        out_shapes = jax.ShapeDtypeStruct((bp, nh, vs), jnp.float32)
        out_specs = out_spec

    result = pl.pallas_call(
        _mhsa_kernel,
        grid=(bp // tb,),
        in_specs=[
            data_spec,                                       # key
            pl.BlockSpec((tb, nh, vs), lambda i: (i, 0, 0)),  # query
            pl.BlockSpec((tb, nh, vs), lambda i: (i, 0, 0)),  # value
            resident((vs, vs)), resident((vs, vs)), resident((vs, vs)),   # Wk^T, Wq^T, Wv^T
            resident((1, vs)), resident((1, vs)), resident((1, vs)),      # bk, bq, bv
            resident((vs, nh * vs)),                                      # selection matrix
        ],
        out_specs=out_specs,
        out_shape=out_shapes,
        compiler_params=pltpu.CompilerParams(dimension_semantics=("parallel",)),
    )(key, query, value, wk_t, wq_t, wv_t, bk_r, bq_r, bv_r, sel)

    if return_weights:
        out_hv, w_hv = result
    else:
        out_hv, w_hv = result, None

    # Wrapper-side reindexing glue back to the module's returned shapes.
    out_hv = out_hv[:b]
    output = out_hv.reshape(b, nh, d, nh).transpose(0, 2, 1, 3).reshape(b, nh, vs)
    if not return_weights:
        return output
    weights = w_hv[:b].reshape(b, nh, d, nh).transpose(0, 2, 1, 3)       # (B, D, H, H)
    return output, weights


def multi_head_self_attention(key, query, value, params, mask=None):
    """Single-sample form matching the PyTorch module: inputs (H, V)."""
    out, wts = multi_head_self_attention_batched(
        key[None], query[None], value[None], params, mask)
    return out[0], wts          # wts has shape (1, D, H, H), as the module returns


def reference(key, query, value, params):
    """Pure-JAX transliteration of the PyTorch forward (for verification)."""
    h, vs = query.shape
    d = vs // h
    wq, bq, wk, bk, wv, bv = params
    q = query @ wq.T + bq
    k = key @ wk.T + bk
    v = value @ wv.T + bv

    def split(x):
        return jnp.transpose(x.reshape(1, h, d, h), (2, 1, 0, 3))

    qs, ks, vsp = split(q), split(k), split(v)
    attn = qs * ks / (ks.shape[-1] ** 0.5)
    w = jax.nn.softmax(attn, axis=1)          # torch Softmax() on a 4-D tensor -> dim=1
    w_r = w.reshape(1, d, h, h)
    v_r = vsp.reshape(1, d, h, h)
    out = jnp.matmul(w_r, v_r)
    return out.reshape(h, vs), w_r


if __name__ == "__main__":
    H, V = NUM_HEADS, VOCAB_SIZE
    rng = jax.random.PRNGKey(0)
    keys = jax.random.split(rng, 9)
    bound = 1.0 / (V ** 0.5)

    def u(k, shape):
        return jax.random.uniform(k, shape, jnp.float32, -bound, bound)

    params = (u(keys[0], (V, V)), u(keys[1], (V,)),
              u(keys[2], (V, V)), u(keys[3], (V,)),
              u(keys[4], (V, V)), u(keys[5], (V,)))

    key_in = jax.random.normal(keys[6], (H, V), jnp.float32)
    query_in = jax.random.normal(keys[7], (H, V), jnp.float32)
    value_in = jax.random.normal(keys[8], (H, V), jnp.float32)

    # Single-sample path (matches the PyTorch module exactly).
    out, weights = multi_head_self_attention(key_in, query_in, value_in, params)
    jax.block_until_ready((out, weights))
    ref_out, ref_w = reference(key_in, query_in, value_in, params)
    assert out.shape == (H, V)
    assert weights.shape == (1, V // H, H, H)
    np.testing.assert_allclose(np.asarray(out), np.asarray(ref_out), rtol=2e-3, atol=2e-3)
    np.testing.assert_allclose(np.asarray(weights), np.asarray(ref_w), rtol=2e-3, atol=2e-3)

    # Batched path: TB samples per grid step; grid=2 "parallel" steps (both v7x TCs get work).
    B, TB = 32, 16
    key_b = jax.random.normal(jax.random.PRNGKey(1), (B, H, V), jnp.float32)
    query_b = jax.random.normal(jax.random.PRNGKey(2), (B, H, V), jnp.float32)
    value_b = jax.random.normal(jax.random.PRNGKey(3), (B, H, V), jnp.float32)
    out_b, wts_b = multi_head_self_attention_batched(
        key_b, query_b, value_b, params, block_size=TB)
    jax.block_until_ready((out_b, wts_b))
    ref_out_b, ref_w_b = jax.vmap(lambda a, c, e: reference(a, c, e, params))(
        key_b, query_b, value_b)
    np.testing.assert_allclose(np.asarray(out_b), np.asarray(ref_out_b), rtol=2e-3, atol=2e-3)
    np.testing.assert_allclose(np.asarray(wts_b), np.asarray(ref_w_b[:, 0]),
                               rtol=2e-3, atol=2e-3)

    # Output-only path: softmax weights not materialized (halves writeback traffic).
    out_only = multi_head_self_attention_batched(
        key_b, query_b, value_b, params, block_size=TB, return_weights=False)
    jax.block_until_ready(out_only)
    np.testing.assert_allclose(np.asarray(out_only), np.asarray(ref_out_b),
                               rtol=2e-3, atol=2e-3)

    # Uneven batch exercises the padding path.
    out_odd, _ = multi_head_self_attention_batched(
        key_b[:13], query_b[:13], value_b[:13], params, block_size=8)
    jax.block_until_ready(out_odd)
    np.testing.assert_allclose(np.asarray(out_odd), np.asarray(ref_out_b[:13]),
                               rtol=2e-3, atol=2e-3)

    print("KERNEL_OK")
</pallas_src>

<mosaic_0001>
module attributes {stable_mosaic.version = 11 : i64} {
  func.func @_mhsa_kernel(%arg0: i32, %arg1: memref<1x8x32xf32, #tpu.memory_space<vmem>>, %arg2: memref<1x8x32xf32, #tpu.memory_space<vmem>>, %arg3: memref<1x8x32xf32, #tpu.memory_space<vmem>>, %arg4: memref<32x32xf32, #tpu.memory_space<vmem>>, %arg5: memref<32x32xf32, #tpu.memory_space<vmem>>, %arg6: memref<32x32xf32, #tpu.memory_space<vmem>>, %arg7: memref<1x32xf32, #tpu.memory_space<vmem>>, %arg8: memref<1x32xf32, #tpu.memory_space<vmem>>, %arg9: memref<1x32xf32, #tpu.memory_space<vmem>>, %arg10: memref<32x256xf32, #tpu.memory_space<vmem>>, %arg11: memref<1x8x32xf32, #tpu.memory_space<vmem>>, %arg12: memref<1x8x32xf32, #tpu.memory_space<vmem>>) attributes {dimension_semantics = [#tpu.dimension_semantics<parallel>], iteration_bounds = array<i64: 1>, scalar_prefetch = 0 : i64, scratch_operands = 0 : i64, tpu.core_type = #tpu.core_type<tc>, window_params = [{transform_indices = @transform_0, window_bounds = array<i64: 1, 8, 32>}, {transform_indices = @transform_1, window_bounds = array<i64: 1, 8, 32>}, {transform_indices = @transform_2, window_bounds = array<i64: 1, 8, 32>}, {pipeline_mode = #tpu.pipeline_mode<synchronous>, transform_indices = @transform_3, window_bounds = array<i64: 32, 32>}, {pipeline_mode = #tpu.pipeline_mode<synchronous>, transform_indices = @transform_4, window_bounds = array<i64: 32, 32>}, {pipeline_mode = #tpu.pipeline_mode<synchronous>, transform_indices = @transform_5, window_bounds = array<i64: 32, 32>}, {pipeline_mode = #tpu.pipeline_mode<synchronous>, transform_indices = @transform_6, window_bounds = array<i64: 1, 32>}, {pipeline_mode = #tpu.pipeline_mode<synchronous>, transform_indices = @transform_7, window_bounds = array<i64: 1, 32>}, {pipeline_mode = #tpu.pipeline_mode<synchronous>, transform_indices = @transform_8, window_bounds = array<i64: 1, 32>}, {pipeline_mode = #tpu.pipeline_mode<synchronous>, transform_indices = @transform_9, window_bounds = array<i64: 32, 256>}, {transform_indices = @transform_10, window_bounds = array<i64: 1, 8, 32>}, {transform_indices = @transform_11, window_bounds = array<i64: 1, 8, 32>}]} {
    %c0 = arith.constant 0 : index
    %c0_0 = arith.constant 0 : index
    %c0_1 = arith.constant 0 : index
    %0 = vector.load %arg1[%c0, %c0_0, %c0_1] : memref<1x8x32xf32, #tpu.memory_space<vmem>>, vector<1x8x32xf32>
    %1 = vector.shape_cast %0 : vector<1x8x32xf32> to vector<8x32xf32>
    %c0_2 = arith.constant 0 : index
    %c0_3 = arith.constant 0 : index
    %c0_4 = arith.constant 0 : index
    %2 = vector.load %arg2[%c0_2, %c0_3, %c0_4] : memref<1x8x32xf32, #tpu.memory_space<vmem>>, vector<1x8x32xf32>
    %3 = vector.shape_cast %2 : vector<1x8x32xf32> to vector<8x32xf32>
    %c0_5 = arith.constant 0 : index
    %c0_6 = arith.constant 0 : index
    %c0_7 = arith.constant 0 : index
    %4 = vector.load %arg3[%c0_5, %c0_6, %c0_7] : memref<1x8x32xf32, #tpu.memory_space<vmem>>, vector<1x8x32xf32>
    %5 = vector.shape_cast %4 : vector<1x8x32xf32> to vector<8x32xf32>
    %c0_8 = arith.constant 0 : index
    %c0_9 = arith.constant 0 : index
    %6 = vector.load %arg4[%c0_8, %c0_9] : memref<32x32xf32, #tpu.memory_space<vmem>>, vector<32x32xf32>
    %cst = arith.constant dense<0.000000e+00> : vector<8x32xf32>
    %7 = tpu.matmul %1, %6, %cst {dimension_numbers = #tpu.dot_dimension_numbers<[1], [0], [0], [1], [0, 0, 1, 1], [], []>} : vector<8x32xf32>, vector<32x32xf32>, vector<8x32xf32> -> vector<8x32xf32>
    %c0_10 = arith.constant 0 : index
    %c0_11 = arith.constant 0 : index
    %8 = vector.load %arg7[%c0_10, %c0_11] : memref<1x32xf32, #tpu.memory_space<vmem>>, vector<1x32xf32>
    %9 = vector.broadcast %8 : vector<1x32xf32> to vector<8x32xf32>
    %10 = arith.addf %7, %9 : vector<8x32xf32>
    %c0_12 = arith.constant 0 : index
    %c0_13 = arith.constant 0 : index
    %11 = vector.load %arg5[%c0_12, %c0_13] : memref<32x32xf32, #tpu.memory_space<vmem>>, vector<32x32xf32>
    %cst_14 = arith.constant dense<0.000000e+00> : vector<8x32xf32>
    %12 = tpu.matmul %3, %11, %cst_14 {dimension_numbers = #tpu.dot_dimension_numbers<[1], [0], [0], [1], [0, 0, 1, 1], [], []>} : vector<8x32xf32>, vector<32x32xf32>, vector<8x32xf32> -> vector<8x32xf32>
    %c0_15 = arith.constant 0 : index
    %c0_16 = arith.constant 0 : index
    %13 = vector.load %arg8[%c0_15, %c0_16] : memref<1x32xf32, #tpu.memory_space<vmem>>, vector<1x32xf32>
    %14 = vector.broadcast %13 : vector<1x32xf32> to vector<8x32xf32>
    %15 = arith.addf %12, %14 : vector<8x32xf32>
    %c0_17 = arith.constant 0 : index
    %c0_18 = arith.constant 0 : index
    %16 = vector.load %arg6[%c0_17, %c0_18] : memref<32x32xf32, #tpu.memory_space<vmem>>, vector<32x32xf32>
    %cst_19 = arith.constant dense<0.000000e+00> : vector<8x32xf32>
    %17 = tpu.matmul %5, %16, %cst_19 {dimension_numbers = #tpu.dot_dimension_numbers<[1], [0], [0], [1], [0, 0, 1, 1], [], []>} : vector<8x32xf32>, vector<32x32xf32>, vector<8x32xf32> -> vector<8x32xf32>
    %c0_20 = arith.constant 0 : index
    %c0_21 = arith.constant 0 : index
    %18 = vector.load %arg9[%c0_20, %c0_21] : memref<1x32xf32, #tpu.memory_space<vmem>>, vector<1x32xf32>
    %19 = vector.broadcast %18 : vector<1x32xf32> to vector<8x32xf32>
    %20 = arith.addf %17, %19 : vector<8x32xf32>
    %21 = arith.mulf %15, %10 : vector<8x32xf32>
    %cst_22 = arith.constant 0.353553385 : f32
    %22 = vector.broadcast %cst_22 : f32 to vector<8x32xf32>
    %23 = arith.mulf %21, %22 : vector<8x32xf32>
    %24 = vector.shape_cast %23 : vector<8x32xf32> to vector<1x8x32xf32>
    %cst_23 = arith.constant dense<0xFF800000> : vector<1x32xf32>
    %25 = vector.multi_reduction <maximumf>, %24, %cst_23 [1] : vector<1x8x32xf32> to vector<1x32xf32>
    %26 = vector.shape_cast %25 : vector<1x32xf32> to vector<1x1x32xf32>
    %27 = vector.broadcast %26 : vector<1x1x32xf32> to vector<1x8x32xf32>
    %28 = arith.subf %24, %27 : vector<1x8x32xf32>
    %29 = math.exp %28 : vector<1x8x32xf32>
    %cst_24 = arith.constant dense<0.000000e+00> : vector<1x32xf32>
    %30 = vector.multi_reduction <add>, %29, %cst_24 [1] : vector<1x8x32xf32> to vector<1x32xf32>
    %31 = vector.shape_cast %30 : vector<1x32xf32> to vector<1x1x32xf32>
    %32 = tpu.reciprocal %31 {approx = true} : vector<1x1x32xf32> -> vector<1x1x32xf32>
    %33 = vector.broadcast %32 : vector<1x1x32xf32> to vector<1x8x32xf32>
    %34 = arith.mulf %29, %33 : vector<1x8x32xf32>
    %c0_25 = arith.constant 0 : index
    %c0_26 = arith.constant 0 : index
    %c0_27 = arith.constant 0 : index
    %35 = vector.load %arg12[%c0_25, %c0_26, %c0_27] : memref<1x8x32xf32, #tpu.memory_space<vmem>>, vector<1x8x32xf32>
    tpu.vector_store %arg12[%c0_25, %c0_26, %c0_27], %34 {strides = array<i32>} : memref<1x8x32xf32, #tpu.memory_space<vmem>>, vector<1x8x32xf32>,
    %36 = vector.shape_cast %34 : vector<1x8x32xf32> to vector<8x32xf32>
    %c0_28 = arith.constant 0 : index
    %c0_29 = arith.constant 0 : index
    %37 = vector.load %arg10[%c0_28, %c0_29] : memref<32x256xf32, #tpu.memory_space<vmem>>, vector<32x256xf32>
    %cst_30 = arith.constant dense<0.000000e+00> : vector<8x256xf32>
    %38 = tpu.matmul %36, %37, %cst_30 {dimension_numbers = #tpu.dot_dimension_numbers<[1], [0], [0], [1], [0, 0, 1, 1], [], []>} : vector<8x32xf32>, vector<32x256xf32>, vector<8x256xf32> -> vector<8x256xf32>
    %39 = vector.shape_cast %38 : vector<8x256xf32> to vector<1x8x256xf32>
    %40 = vector.shape_cast %20 : vector<8x32xf32> to vector<1x8x32xf32>
    %41 = vector.extract_strided_slice %39 {offsets = [0, 0, 0], sizes = [1, 8, 32], strides = [1, 1, 1]} : vector<1x8x256xf32> to vector<1x8x32xf32>
    %42 = vector.extract_strided_slice %40 {offsets = [0, 0, 0], sizes = [1, 1, 32], strides = [1, 1, 1]} : vector<1x8x32xf32> to vector<1x1x32xf32>
    %43 = vector.broadcast %42 : vector<1x1x32xf32> to vector<1x8x32xf32>
    %44 = arith.mulf %41, %43 : vector<1x8x32xf32>
    %45 = vector.extract_strided_slice %39 {offsets = [0, 0, 32], sizes = [1, 8, 32], strides = [1, 1, 1]} : vector<1x8x256xf32> to vector<1x8x32xf32>
    %46 = vector.extract_strided_slice %40 {offsets = [0, 1, 0], sizes = [1, 1, 32], strides = [1, 1, 1]} : vector<1x8x32xf32> to vector<1x1x32xf32>
    %47 = vector.broadcast %46 : vector<1x1x32xf32> to vector<1x8x32xf32>
    %48 = arith.mulf %45, %47 : vector<1x8x32xf32>
    %49 = arith.addf %44, %48 : vector<1x8x32xf32>
    %50 = vector.extract_strided_slice %39 {offsets = [0, 0, 64], sizes = [1, 8, 32], strides = [1, 1, 1]} : vector<1x8x256xf32> to vector<1x8x32xf32>
    %51 = vector.extract_strided_slice %40 {offsets = [0, 2, 0], sizes = [1, 1, 32], strides = [1, 1, 1]} : vector<1x8x32xf32> to vector<1x1x32xf32>
    %52 = vector.broadcast %51 : vector<1x1x32xf32> to vector<1x8x32xf32>
    %53 = arith.mulf %50, %52 : vector<1x8x32xf32>
    %54 = arith.addf %49, %53 : vector<1x8x32xf32>
    %55 = vector.extract_strided_slice %39 {offsets = [0, 0, 96], sizes = [1, 8, 32], strides = [1, 1, 1]} : vector<1x8x256xf32> to vector<1x8x32xf32>
    %56 = vector.extract_strided_slice %40 {offsets = [0, 3, 0], sizes = [1, 1, 32], strides = [1, 1, 1]} : vector<1x8x32xf32> to vector<1x1x32xf32>
    %57 = vector.broadcast %56 : vector<1x1x32xf32> to vector<1x8x32xf32>
    %58 = arith.mulf %55, %57 : vector<1x8x32xf32>
    %59 = arith.addf %54, %58 : vector<1x8x32xf32>
    %60 = vector.extract_strided_slice %39 {offsets = [0, 0, 128], sizes = [1, 8, 32], strides = [1, 1, 1]} : vector<1x8x256xf32> to vector<1x8x32xf32>
    %61 = vector.extract_strided_slice %40 {offsets = [0, 4, 0], sizes = [1, 1, 32], strides = [1, 1, 1]} : vector<1x8x32xf32> to vector<1x1x32xf32>
    %62 = vector.broadcast %61 : vector<1x1x32xf32> to vector<1x8x32xf32>
    %63 = arith.mulf %60, %62 : vector<1x8x32xf32>
    %64 = arith.addf %59, %63 : vector<1x8x32xf32>
    %65 = vector.extract_strided_slice %39 {offsets = [0, 0, 160], sizes = [1, 8, 32], strides = [1, 1, 1]} : vector<1x8x256xf32> to vector<1x8x32xf32>
    %66 = vector.extract_strided_slice %40 {offsets = [0, 5, 0], sizes = [1, 1, 32], strides = [1, 1, 1]} : vector<1x8x32xf32> to vector<1x1x32xf32>
    %67 = vector.broadcast %66 : vector<1x1x32xf32> to vector<1x8x32xf32>
    %68 = arith.mulf %65, %67 : vector<1x8x32xf32>
    %69 = arith.addf %64, %68 : vector<1x8x32xf32>
    %70 = vector.extract_strided_slice %39 {offsets = [0, 0, 192], sizes = [1, 8, 32], strides = [1, 1, 1]} : vector<1x8x256xf32> to vector<1x8x32xf32>
    %71 = vector.extract_strided_slice %40 {offsets = [0, 6, 0], sizes = [1, 1, 32], strides = [1, 1, 1]} : vector<1x8x32xf32> to vector<1x1x32xf32>
    %72 = vector.broadcast %71 : vector<1x1x32xf32> to vector<1x8x32xf32>
    %73 = arith.mulf %70, %72 : vector<1x8x32xf32>
    %74 = arith.addf %69, %73 : vector<1x8x32xf32>
    %75 = vector.extract_strided_slice %39 {offsets = [0, 0, 224], sizes = [1, 8, 32], strides = [1, 1, 1]} : vector<1x8x256xf32> to vector<1x8x32xf32>
    %76 = vector.extract_strided_slice %40 {offsets = [0, 7, 0], sizes = [1, 1, 32], strides = [1, 1, 1]} : vector<1x8x32xf32> to vector<1x1x32xf32>
    %77 = vector.broadcast %76 : vector<1x1x32xf32> to vector<1x8x32xf32>
    %78 = arith.mulf %75, %77 : vector<1x8x32xf32>
    %79 = arith.addf %74, %78 : vector<1x8x32xf32>
    %c0_31 = arith.constant 0 : index
    %c0_32 = arith.constant 0 : index
    %c0_33 = arith.constant 0 : index
    %80 = vector.load %arg11[%c0_31, %c0_32, %c0_33] : memref<1x8x32xf32, #tpu.memory_space<vmem>>, vector<1x8x32xf32>
    tpu.vector_store %arg11[%c0_31, %c0_32, %c0_33], %79 {strides = array<i32>} : memref<1x8x32xf32, #tpu.memory_space<vmem>>, vector<1x8x32xf32>,
    return
  }
  func.func @transform_0(%arg0: i32) -> (i32, i32, i32) {
    %c0_i32 = arith.constant 0 : i32
    %c0_i32_0 = arith.constant 0 : i32
    %c0_i32_1 = arith.constant 0 : i32
    return %arg0, %c0_i32, %c0_i32_0 : i32, i32, i32
  }
  func.func @transform_1(%arg0: i32) -> (i32, i32, i32) {
    %c0_i32 = arith.constant 0 : i32
    %c0_i32_0 = arith.constant 0 : i32
    %c0_i32_1 = arith.constant 0 : i32
    return %arg0, %c0_i32, %c0_i32_0 : i32, i32, i32
  }
  func.func @transform_2(%arg0: i32) -> (i32, i32, i32) {
    %c0_i32 = arith.constant 0 : i32
    %c0_i32_0 = arith.constant 0 : i32
    %c0_i32_1 = arith.constant 0 : i32
    return %arg0, %c0_i32, %c0_i32_0 : i32, i32, i32
  }
  func.func @transform_3(%arg0: i32) -> (i32, i32) {
    %c0_i32 = arith.constant 0 : i32
    %c0_i32_0 = arith.constant 0 : i32
    %c0_i32_1 = arith.constant 0 : i32
    return %c0_i32, %c0_i32_0 : i32, i32
  }
  func.func @transform_4(%arg0: i32) -> (i32, i32) {
    %c0_i32 = arith.constant 0 : i32
    %c0_i32_0 = arith.constant 0 : i32
    %c0_i32_1 = arith.constant 0 : i32
    return %c0_i32, %c0_i32_0 : i32, i32
  }
  func.func @transform_5(%arg0: i32) -> (i32, i32) {
    %c0_i32 = arith.constant 0 : i32
    %c0_i32_0 = arith.constant 0 : i32
    %c0_i32_1 = arith.constant 0 : i32
    return %c0_i32, %c0_i32_0 : i32, i32
  }
  func.func @transform_6(%arg0: i32) -> (i32, i32) {
    %c0_i32 = arith.constant 0 : i32
    %c0_i32_0 = arith.constant 0 : i32
    %c0_i32_1 = arith.constant 0 : i32
    return %c0_i32, %c0_i32_0 : i32, i32
  }
  func.func @transform_7(%arg0: i32) -> (i32, i32) {
    %c0_i32 = arith.constant 0 : i32
    %c0_i32_0 = arith.constant 0 : i32
    %c0_i32_1 = arith.constant 0 : i32
    return %c0_i32, %c0_i32_0 : i32, i32
  }
  func.func @transform_8(%arg0: i32) -> (i32, i32) {
    %c0_i32 = arith.constant 0 : i32
    %c0_i32_0 = arith.constant 0 : i32
    %c0_i32_1 = arith.constant 0 : i32
    return %c0_i32, %c0_i32_0 : i32, i32
  }
  func.func @transform_9(%arg0: i32) -> (i32, i32) {
    %c0_i32 = arith.constant 0 : i32
    %c0_i32_0 = arith.constant 0 : i32
    %c0_i32_1 = arith.constant 0 : i32
    return %c0_i32, %c0_i32_0 : i32, i32
  }
  func.func @transform_10(%arg0: i32) -> (i32, i32, i32) {
    %c0_i32 = arith.constant 0 : i32
    %c0_i32_0 = arith.constant 0 : i32
    %c0_i32_1 = arith.constant 0 : i32
    return %arg0, %c0_i32, %c0_i32_0 : i32, i32, i32
  }
  func.func @transform_11(%arg0: i32) -> (i32, i32, i32) {
    %c0_i32 = arith.constant 0 : i32
    %c0_i32_0 = arith.constant 0 : i32
    %c0_i32_1 = arith.constant 0 : i32
    return %arg0, %c0_i32, %c0_i32_0 : i32, i32, i32
  }
}

</mosaic_0001>

<llo_original>
// kernel: tpu_custom_call.1
$region0: #{tpu_custom_call.1}
  #allocation0 [shape = 'u32[]', space=smem, size = 0x4, offset = 0x4, fixed_abs, tag = 'smem constant byte address 0x4 - core index']
  #allocation1 [shape = 'u32[144,128]{1,0:T(1,128)}', space=vmem, size = 0x12000, scoped, tag = 'internal scratch']
  %s0 = inlined_call_operand.hbm [shape: f32[1,8,32], index: 0, kind: input, shape index: {}]
  %s1 = inlined_call_operand.hbm [shape: f32[1,8,32], index: 1, kind: input, shape index: {}]
  %s2 = inlined_call_operand.hbm [shape: f32[1,8,32], index: 2, kind: input, shape index: {}]
  %s3 = inlined_call_operand.hbm [shape: f32[32,32], index: 3, kind: input, shape index: {}]
  %s4 = inlined_call_operand.hbm [shape: f32[32,32], index: 4, kind: input, shape index: {}]
  %s5 = inlined_call_operand.hbm [shape: f32[32,32], index: 5, kind: input, shape index: {}]
  %s6 = inlined_call_operand.vmem [shape: f32[1,32], index: 6, kind: input, shape index: {}]
  %s7 = inlined_call_operand.vmem [shape: f32[1,32], index: 7, kind: input, shape index: {}]
  %s8 = inlined_call_operand.vmem [shape: f32[1,32], index: 8, kind: input, shape index: {}]
  %s9 = inlined_call_operand.hbm [shape: f32[32,256], index: 9, kind: input, shape index: {}]
  %s10 = inlined_call_operand.hbm [shape: f32[1,8,32], index: 10, kind: output, shape index: {0}]
  %s11 = inlined_call_operand.hbm [shape: f32[1,8,32], index: 11, kind: output, shape index: {1}]
  %12 = xla_tuple %s10, %s11
  %s13 = sld [smem:[#allocation0]]
  $region86: #{tpu_custom_call.1} parent=0
    _
  %s15 = ssub.s32 1, %s13
  %s16 = scalar_select 0, %s15, %s13
  $region1: #{tpu_custom_call.1} parent=0
    #allocation2 [shape = 'u8[4096]{0}', space=vmem, size = 0x1000, scoped, tag = 'input window, operand 0, single buffered']
    #allocation3 [shape = 's32[1]{0}', space=sflag, size = 0x4, scoped, tag = 'scoped memory for tpu_custom_call.1']
    #allocation4 [shape = 's32[1]{0}', space=sflag, size = 0x4, scoped, tag = 'scoped memory for tpu_custom_call.1']
    #allocation5 [shape = 'u8[4096]{0}', space=vmem, size = 0x1000, scoped, tag = 'input window, operand 1, single buffered']
    #allocation6 [shape = 's32[1]{0}', space=sflag, size = 0x4, scoped, tag = 'scoped memory for tpu_custom_call.1']
    #allocation7 [shape = 'u8[4096]{0}', space=vmem, size = 0x1000, scoped, tag = 'input window, operand 2, single buffered']
    #allocation8 [shape = 'u8[16384]{0}', space=vmem, size = 0x4000, scoped, tag = 'input window, operand 3, single buffered']
    #allocation9 [shape = 's32[1]{0}', space=sflag, size = 0x4, scoped, tag = 'scoped memory for tpu_custom_call.1']
    #allocation10 [shape = 'u8[16384]{0}', space=vmem, size = 0x4000, scoped, tag = 'input window, operand 4, single buffered']
    #allocation11 [shape = 'u8[16384]{0}', space=vmem, size = 0x4000, scoped, tag = 'input window, operand 5, single buffered']
    #allocation12 [shape = 's32[1]{0}', space=sflag, size = 0x4, scoped, tag = 'scoped memory for tpu_custom_call.1']
    #allocation13 [shape = 'u8[32768]{0}', space=vmem, size = 0x8000, scoped, tag = 'input window, operand 9, single buffered']
    #allocation14 [shape = 'u8[4096]{0}', space=vmem, size = 0x1000, scoped, tag = 'output window, operand 0, single buffered']
    #allocation15 [shape = 'u8[4096]{0}', space=vmem, size = 0x1000, scoped, tag = 'output window, operand 1, single buffered']
    #allocation16 [shape = 's32[1]{0}', space=sflag, size = 0x4, scoped, tag = 'scoped memory for tpu_custom_call.1']
    %17 = vsyncpa [#allocation3], 0
    %18 = vsyncpa [#allocation6], 0
    %19 = vsyncpa [#allocation9], 0
    %20 = vsyncpa [#allocation12], 0
    %21 = vsyncpa [#allocation4], 0
    %22 = vsyncpa [#allocation16], 0
    // Predicated region
    $region2: #{tpu_custom_call.1} parent=1 // pred_check
      _
    $region3: #{tpu_custom_call.1} parent=1 // pred_check_branch
      %24 = sbr.rel (0) target = $region5
    $region4: #{tpu_custom_call.1} parent=1 // pred_region
      %s26 = ssub.s32 128, 128
      %27 = vsyncadd [#allocation3], %s26
      %s29 = sshll.u32 [#allocation2], 4
      %s30 = int_to_ptr.vmem [resolvable:$true] %s29
      %32 = dma.hbm_to_vmem [thread:$0]  %s0, 128, %s30, [#allocation3]
    $region5: #{tpu_custom_call.1} parent=1 // pred_fallthru
      _
    // Predicated region
    $region6: #{tpu_custom_call.1} parent=1 // pred_check
      _
    $region7: #{tpu_custom_call.1} parent=1 // pred_check_branch
      %34 = sbr.rel (0) target = $region9
    $region8: #{tpu_custom_call.1} parent=1 // pred_region
      %s36 = ssub.s32 128, 128
      %37 = vsyncadd [#allocation6], %s36
      %s39 = sshll.u32 [#allocation5], 4
      %s40 = int_to_ptr.vmem [resolvable:$true] %s39
      %42 = dma.hbm_to_vmem [thread:$0]  %s1, 128, %s40, [#allocation6]
    $region9: #{tpu_custom_call.1} parent=1 // pred_fallthru
      _
    // Predicated region
    $region10: #{tpu_custom_call.1} parent=1 // pred_check
      _
    $region11: #{tpu_custom_call.1} parent=1 // pred_check_branch
      %44 = sbr.rel (0) target = $region13
    $region12: #{tpu_custom_call.1} parent=1 // pred_region
      %s46 = ssub.s32 128, 128
      %47 = vsyncadd [#allocation6], %s46
      %s49 = sshll.u32 [#allocation7], 4
      %s50 = int_to_ptr.vmem [resolvable:$true] %s49
      %52 = dma.hbm_to_vmem [thread:$0]  %s2, 128, %s50, [#allocation6]
    $region13: #{tpu_custom_call.1} parent=1 // pred_fallthru
      _
    // Predicated region
    $region14: #{tpu_custom_call.1} parent=1 // pred_check
      _
    $region15: #{tpu_custom_call.1} parent=1 // pred_check_branch
      %54 = sbr.rel (0) target = $region17
    $region16: #{tpu_custom_call.1} parent=1 // pred_region
      %s56 = ssub.s32 512, 512
      %57 = vsyncadd [#allocation9], %s56
      %s58 = sshll.u32 [#allocation8], 4
      %s59 = int_to_ptr.vmem [resolvable:$true] %s58
      %64 = dma.hbm_to_vmem [thread:$0]  %s3, 512, %s59, [#allocation9], 128, 128, 8
    $region17: #{tpu_custom_call.1} parent=1 // pred_fallthru
      _
    // Predicated region
    $region18: #{tpu_custom_call.1} parent=1 // pred_check
      _
    $region19: #{tpu_custom_call.1} parent=1 // pred_check_branch
      %66 = sbr.rel (0) target = $region21
    $region20: #{tpu_custom_call.1} parent=1 // pred_region
      %s68 = ssub.s32 512, 512
      %69 = vsyncadd [#allocation9], %s68
      %s70 = sshll.u32 [#allocation10], 4
      %s71 = int_to_ptr.vmem [resolvable:$true] %s70
      %76 = dma.hbm_to_vmem [thread:$0]  %s4, 512, %s71, [#allocation9], 128, 128, 8
    $region21: #{tpu_custom_call.1} parent=1 // pred_fallthru
      _
    // Predicated region
    $region22: #{tpu_custom_call.1} parent=1 // pred_check
      _
    $region23: #{tpu_custom_call.1} parent=1 // pred_check_branch
      %78 = sbr.rel (0) target = $region25
    $region24: #{tpu_custom_call.1} parent=1 // pred_region
      %s80 = ssub.s32 512, 512
      %81 = vsyncadd [#allocation12], %s80
      %s82 = sshll.u32 [#allocation11], 4
      %s83 = int_to_ptr.vmem [resolvable:$true] %s82
      %88 = dma.hbm_to_vmem [thread:$0]  %s5, 512, %s83, [#allocation12], 128, 128, 8
    $region25: #{tpu_custom_call.1} parent=1 // pred_fallthru
      _
    // Predicated region
    $region26: #{tpu_custom_call.1} parent=1 // pred_check
      _
    $region27: #{tpu_custom_call.1} parent=1 // pred_check_branch
      %90 = sbr.rel (0) target = $region29
    $region28: #{tpu_custom_call.1} parent=1 // pred_region
      _
    $region29: #{tpu_custom_call.1} parent=1 // pred_fallthru
      _
    // Predicated region
    $region30: #{tpu_custom_call.1} parent=1 // pred_check
      _
    $region31: #{tpu_custom_call.1} parent=1 // pred_check_branch
      %92 = sbr.rel (0) target = $region33
    $region32: #{tpu_custom_call.1} parent=1 // pred_region
      _
    $region33: #{tpu_custom_call.1} parent=1 // pred_fallthru
      _
    // Predicated region
    $region34: #{tpu_custom_call.1} parent=1 // pred_check
      _
    $region35: #{tpu_custom_call.1} parent=1 // pred_check_branch
      %94 = sbr.rel (0) target = $region37
    $region36: #{tpu_custom_call.1} parent=1 // pred_region
      _
    $region37: #{tpu_custom_call.1} parent=1 // pred_fallthru
      _
    // Predicated region
    $region38: #{tpu_custom_call.1} parent=1 // pred_check
      _
    $region39: #{tpu_custom_call.1} parent=1 // pred_check_branch
      %96 = sbr.rel (0) target = $region41
    $region40: #{tpu_custom_call.1} parent=1 // pred_region
      %s98 = ssub.s32 1024, 1024
      %99 = vsyncadd [#allocation12], %s98
      %s100 = sshll.u32 [#allocation13], 4
      %s101 = int_to_ptr.vmem [resolvable:$true] %s100
      %106 = dma.hbm_to_vmem [thread:$0]  %s9, 1024, %s101, [#allocation12], 256, 256, 16
    $region41: #{tpu_custom_call.1} parent=1 // pred_fallthru
      _
    // Predicated region
    $region42: #{tpu_custom_call.1} parent=1 // pred_check
      _
    $region43: #{tpu_custom_call.1} parent=1 // pred_check_branch
      %108 = sbr.rel (0) target = $region45
    $region44: #{tpu_custom_call.1} parent=1 // pred_region
      %109 = dma.done [#allocation3], 128
    $region45: #{tpu_custom_call.1} parent=1 // pred_fallthru
      _
    // Predicated region
    $region46: #{tpu_custom_call.1} parent=1 // pred_check
      _
    $region47: #{tpu_custom_call.1} parent=1 // pred_check_branch
      %111 = sbr.rel (0) target = $region49
    $region48: #{tpu_custom_call.1} parent=1 // pred_region
      %112 = dma.done [#allocation6], 128
    $region49: #{tpu_custom_call.1} parent=1 // pred_fallthru
      _
    // Predicated region
    $region50: #{tpu_custom_call.1} parent=1 // pred_check
      _
    $region51: #{tpu_custom_call.1} parent=1 // pred_check_branch
      %114 = sbr.rel (0) target = $region53
    $region52: #{tpu_custom_call.1} parent=1 // pred_region
      %115 = dma.done [#allocation6], 128
    $region53: #{tpu_custom_call.1} parent=1 // pred_fallthru
      _
    // Predicated region
    $region54: #{tpu_custom_call.1} parent=1 // pred_check
      _
    $region55: #{tpu_custom_call.1} parent=1 // pred_check_branch
      %117 = sbr.rel (0) target = $region57
    $region56: #{tpu_custom_call.1} parent=1 // pred_region
      %118 = dma.done [#allocation9], 512
    $region57: #{tpu_custom_call.1} parent=1 // pred_fallthru
      _
    // Predicated region
    $region58: #{tpu_custom_call.1} parent=1 // pred_check
      _
    $region59: #{tpu_custom_call.1} parent=1 // pred_check_branch
      %120 = sbr.rel (0) target = $region61
    $region60: #{tpu_custom_call.1} parent=1 // pred_region
      %121 = dma.done [#allocation9], 512
    $region61: #{tpu_custom_call.1} parent=1 // pred_fallthru
      _
    // Predicated region
    $region62: #{tpu_custom_call.1} parent=1 // pred_check
      _
    $region63: #{tpu_custom_call.1} parent=1 // pred_check_branch
      %123 = sbr.rel (0) target = $region65
    $region64: #{tpu_custom_call.1} parent=1 // pred_region
      %124 = dma.done [#allocation12], 512
    $region65: #{tpu_custom_call.1} parent=1 // pred_fallthru
      _
    // Predicated region
    $region66: #{tpu_custom_call.1} parent=1 // pred_check
      _
    $region67: #{tpu_custom_call.1} parent=1 // pred_check_branch
      %126 = sbr.rel (0) target = $region69
    $region68: #{tpu_custom_call.1} parent=1 // pred_region
      %127 = dma.done [#allocation12], 1024
    $region69: #{tpu_custom_call.1} parent=1 // pred_fallthru
      _
    %v128 = vld [vmem:[#allocation2] sm:$0xff]
    %v129 = vld [vmem:[#allocation5] sm:$0xff]
    %v130 = vld [vmem:[#allocation7] sm:$0xff]
    %v131 = vld [vmem:[#allocation8] sm:$0xff]
    %v132 = vld [vmem:[#allocation8 + $0x8] sm:$0xff]
    %v133 = vld [vmem:[#allocation8 + $0x10] sm:$0xff]
    %v134 = vld [vmem:[#allocation8 + $0x18] sm:$0xff]
    %v135 = vld [vmem:[%s6] sm:$0x1]
    %v137 = vlaneseq
    %v138 = vshrl.u32 %v137, 7
    %v139 = vsub.s32 0, %v138
    %v140 = vrot.slane %v135, %v139
    %vm142 = vcmask 261120
    %v144 = vsel %vm142, %v128, 0
    %146 = vmatprep.subr.mxu0 0.0
    %147 = vmatpush1.msra.mxu0 %v131
    %148 = vmatprep.subr.mxu0 0.0
    %149 = vmatpush1.msra.mxu0 %v132
    %150 = vmatprep.subr.mxu0 0.0
    %151 = vmatpush1.msra.mxu0 %v133
    %152 = vmatprep.subr.mxu0 0.0
    %153 = vmatpush1.msra.mxu0 %v134
    %154 = vmatprep.subr.mxu0 0.0
    %155 = vmatpush1.msra.mxu0 0.0
    %156 = vmatprep.subr.mxu0 0.0
    %157 = vmatpush1.msra.mxu0 0.0
    %158 = vmatprep.subr.mxu0 0.0
    %159 = vmatpush1.msra.mxu0 0.0
    %160 = vmatprep.subr.mxu0 0.0
    %161 = vmatpush1.msra.mxu0 0.0
    %162 = vmatprep.subr.mxu0 0.0
    %163 = vmatpush1.msra.mxu0 0.0
    %164 = vmatprep.subr.mxu0 0.0
    %165 = vmatpush1.msra.mxu0 0.0
    %166 = vmatprep.subr.mxu0 0.0
    %167 = vmatpush1.msra.mxu0 0.0
    %168 = vmatprep.subr.mxu0 0.0
    %169 = vmatpush1.msra.mxu0 0.0
    %170 = vmatprep.subr.mxu0 0.0
    %171 = vmatpush1.msra.mxu0 0.0
    %172 = vmatprep.subr.mxu0 0.0
    %173 = vmatpush1.msra.mxu0 0.0
    %174 = vmatprep.subr.mxu0 0.0
    %175 = vmatpush1.msra.mxu0 0.0
    %176 = vmatprep.subr.mxu0 0.0
    %177 = vmatpush1.msra.mxu0 0.0
    %178 = vmatprep.subr.mxu0 0.0
    %179 = vmatpush1.msra.mxu0 0.0
    %180 = vmatprep.subr.mxu0 0.0
    %181 = vmatpush1.msra.mxu0 0.0
    %182 = vmatprep.subr.mxu0 0.0
    %183 = vmatpush1.msra.mxu0 0.0
    %184 = vmatprep.subr.mxu0 0.0
    %185 = vmatpush1.msra.mxu0 0.0
    %186 = vmatprep.subr.mxu0 0.0
    %187 = vmatpush1.msra.mxu0 0.0
    %188 = vmatprep.subr.mxu0 0.0
    %189 = vmatpush1.msra.mxu0 0.0
    %190 = vmatprep.subr.mxu0 0.0
    %191 = vmatpush1.msra.mxu0 0.0
    %192 = vmatprep.subr.mxu0 0.0
    %193 = vmatpush1.msra.mxu0 0.0
    %194 = vmatprep.subr.mxu0 0.0
    %195 = vmatpush1.msra.mxu0 0.0
    %196 = vmatprep.subr.mxu0 0.0
    %197 = vmatpush1.msra.mxu0 0.0
    %198 = vmatprep.subr.mxu0 0.0
    %199 = vmatpush1.msra.mxu0 0.0
    %200 = vmatprep.subr.mxu0 0.0
    %201 = vmatpush1.msra.mxu0 0.0
    %202 = vmatprep.subr.mxu0 0.0
    %203 = vmatpush1.msra.mxu0 0.0
    %204 = vmatprep.subr.mxu0 0.0
    %205 = vmatpush1.msra.mxu0 0.0
    %206 = vmatprep.subr.mxu0 0.0
    %207 = vmatpush1.msra.mxu0 0.0
    %208 = vmatprep.subr.mxu0 0.0
    %209 = vmatpush1.msra.mxu0 0.0
    %210 = vmatprep.mubr.f32.mxu0 0.0
    %211 = vmatmul.mubr.f32.gmra.mrb[0].mxu0 %v144
    %v212 = vpop.f32.mrb[0].mxu0
    %v213 = vadd.f32 %v140, %v212
    %v214 = vpop.f32.mrb[0].mxu0
    %215 = vdwg.mxu0
    %v216 = vld [vmem:[#allocation10] sm:$0xff]
    %v217 = vld [vmem:[#allocation10 + $0x8] sm:$0xff]
    %v218 = vld [vmem:[#allocation10 + $0x10] sm:$0xff]
    %v219 = vld [vmem:[#allocation10 + $0x18] sm:$0xff]
    %v220 = vld [vmem:[%s7] sm:$0x1]
    %v222 = vlaneseq
    %v223 = vshrl.u32 %v222, 7
    %v224 = vsub.s32 0, %v223
    %v225 = vrot.slane %v220, %v224
    %v228 = vsel %vm142, %v129, 0
    %230 = vmatprep.subr.mxu0 0.0
    %231 = vmatpush1.msra.mxu0 %v216
    %232 = vmatprep.subr.mxu0 0.0
    %233 = vmatpush1.msra.mxu0 %v217
    %234 = vmatprep.subr.mxu0 0.0
    %235 = vmatpush1.msra.mxu0 %v218
    %236 = vmatprep.subr.mxu0 0.0
    %237 = vmatpush1.msra.mxu0 %v219
    %238 = vmatprep.subr.mxu0 0.0
    %239 = vmatpush1.msra.mxu0 0.0
    %240 = vmatprep.subr.mxu0 0.0
    %241 = vmatpush1.msra.mxu0 0.0
    %242 = vmatprep.subr.mxu0 0.0
    %243 = vmatpush1.msra.mxu0 0.0
    %244 = vmatprep.subr.mxu0 0.0
    %245 = vmatpush1.msra.mxu0 0.0
    %246 = vmatprep.subr.mxu0 0.0
    %247 = vmatpush1.msra.mxu0 0.0
    %248 = vmatprep.subr.mxu0 0.0
    %249 = vmatpush1.msra.mxu0 0.0
    %250 = vmatprep.subr.mxu0 0.0
    %251 = vmatpush1.msra.mxu0 0.0
    %252 = vmatprep.subr.mxu0 0.0
    %253 = vmatpush1.msra.mxu0 0.0
    %254 = vmatprep.subr.mxu0 0.0
    %255 = vmatpush1.msra.mxu0 0.0
    %256 = vmatprep.subr.mxu0 0.0
    %257 = vmatpush1.msra.mxu0 0.0
    %258 = vmatprep.subr.mxu0 0.0
    %259 = vmatpush1.msra.mxu0 0.0
    %260 = vmatprep.subr.mxu0 0.0
    %261 = vmatpush1.msra.mxu0 0.0
    %262 = vmatprep.subr.mxu0 0.0
    %263 = vmatpush1.msra.mxu0 0.0
    %264 = vmatprep.subr.mxu0 0.0
    %265 = vmatpush1.msra.mxu0 0.0
    %266 = vmatprep.subr.mxu0 0.0
    %267 = vmatpush1.msra.mxu0 0.0
    %268 = vmatprep.subr.mxu0 0.0
    %269 = vmatpush1.msra.mxu0 0.0
    %270 = vmatprep.subr.mxu0 0.0
    %271 = vmatpush1.msra.mxu0 0.0
    %272 = vmatprep.subr.mxu0 0.0
    %273 = vmatpush1.msra.mxu0 0.0
    %274 = vmatprep.subr.mxu0 0.0
    %275 = vmatpush1.msra.mxu0 0.0
    %276 = vmatprep.subr.mxu0 0.0
    %277 = vmatpush1.msra.mxu0 0.0
    %278 = vmatprep.subr.mxu0 0.0
    %279 = vmatpush1.msra.mxu0 0.0
    %280 = vmatprep.subr.mxu0 0.0
    %281 = vmatpush1.msra.mxu0 0.0
    %282 = vmatprep.subr.mxu0 0.0
    %283 = vmatpush1.msra.mxu0 0.0
    %284 = vmatprep.subr.mxu0 0.0
    %285 = vmatpush1.msra.mxu0 0.0
    %286 = vmatprep.subr.mxu0 0.0
    %287 = vmatpush1.msra.mxu0 0.0
    %288 = vmatprep.subr.mxu0 0.0
    %289 = vmatpush1.msra.mxu0 0.0
    %290 = vmatprep.subr.mxu0 0.0
    %291 = vmatpush1.msra.mxu0 0.0
    %292 = vmatprep.subr.mxu0 0.0
    %293 = vmatpush1.msra.mxu0 0.0
    %294 = vmatprep.mubr.f32.mxu0 0.0
    %295 = vmatmul.mubr.f32.gmra.mrb[0].mxu0 %v228
    %v296 = vpop.f32.mrb[0].mxu0
    %v297 = vadd.f32 %v225, %v296
    %v298 = vpop.f32.mrb[0].mxu0
    %299 = vdwg.mxu0
    %v300 = vld [vmem:[#allocation11] sm:$0xff]
    %v301 = vld [vmem:[#allocation11 + $0x8] sm:$0xff]
    %v302 = vld [vmem:[#allocation11 + $0x10] sm:$0xff]
    %v303 = vld [vmem:[#allocation11 + $0x18] sm:$0xff]
    %v304 = vld [vmem:[%s8] sm:$0x1]
    %v306 = vlaneseq
    %v307 = vshrl.u32 %v306, 7
    %v308 = vsub.s32 0, %v307
    %v309 = vrot.slane %v304, %v308
    %v312 = vsel %vm142, %v130, 0
    %314 = vmatprep.subr.mxu0 0.0
    %315 = vmatpush1.msra.mxu0 %v300
    %316 = vmatprep.subr.mxu0 0.0
    %317 = vmatpush1.msra.mxu0 %v301
    %318 = vmatprep.subr.mxu0 0.0
    %319 = vmatpush1.msra.mxu0 %v302
    %320 = vmatprep.subr.mxu0 0.0
    %321 = vmatpush1.msra.mxu0 %v303
    %322 = vmatprep.subr.mxu0 0.0
    %323 = vmatpush1.msra.mxu0 0.0
    %324 = vmatprep.subr.mxu0 0.0
    %325 = vmatpush1.msra.mxu0 0.0
    %326 = vmatprep.subr.mxu0 0.0
    %327 = vmatpush1.msra.mxu0 0.0
    %328 = vmatprep.subr.mxu0 0.0
    %329 = vmatpush1.msra.mxu0 0.0
    %330 = vmatprep.subr.mxu0 0.0
    %331 = vmatpush1.msra.mxu0 0.0
    %332 = vmatprep.subr.mxu0 0.0
    %333 = vmatpush1.msra.mxu0 0.0
    %334 = vmatprep.subr.mxu0 0.0
    %335 = vmatpush1.msra.mxu0 0.0
    %336 = vmatprep.subr.mxu0 0.0
    %337 = vmatpush1.msra.mxu0 0.0
    %338 = vmatprep.subr.mxu0 0.0
    %339 = vmatpush1.msra.mxu0 0.0
    %340 = vmatprep.subr.mxu0 0.0
    %341 = vmatpush1.msra.mxu0 0.0
    %342 = vmatprep.subr.mxu0 0.0
    %343 = vmatpush1.msra.mxu0 0.0
    %344 = vmatprep.subr.mxu0 0.0
    %345 = vmatpush1.msra.mxu0 0.0
    %346 = vmatprep.subr.mxu0 0.0
    %347 = vmatpush1.msra.mxu0 0.0
    %348 = vmatprep.subr.mxu0 0.0
    %349 = vmatpush1.msra.mxu0 0.0
    %350 = vmatprep.subr.mxu0 0.0
    %351 = vmatpush1.msra.mxu0 0.0
    %352 = vmatprep.subr.mxu0 0.0
    %353 = vmatpush1.msra.mxu0 0.0
    %354 = vmatprep.subr.mxu0 0.0
    %355 = vmatpush1.msra.mxu0 0.0
    %356 = vmatprep.subr.mxu0 0.0
    %357 = vmatpush1.msra.mxu0 0.0
    %358 = vmatprep.subr.mxu0 0.0
    %359 = vmatpush1.msra.mxu0 0.0
    %360 = vmatprep.subr.mxu0 0.0
    %361 = vmatpush1.msra.mxu0 0.0
    %362 = vmatprep.subr.mxu0 0.0
    %363 = vmatpush1.msra.mxu0 0.0
    %364 = vmatprep.subr.mxu0 0.0
    %365 = vmatpush1.msra.mxu0 0.0
    %366 = vmatprep.subr.mxu0 0.0
    %367 = vmatpush1.msra.mxu0 0.0
    %368 = vmatprep.subr.mxu0 0.0
    %369 = vmatpush1.msra.mxu0 0.0
    %370 = vmatprep.subr.mxu0 0.0
    %371 = vmatpush1.msra.mxu0 0.0
    %372 = vmatprep.subr.mxu0 0.0
    %373 = vmatpush1.msra.mxu0 0.0
    %374 = vmatprep.subr.mxu0 0.0
    %375 = vmatpush1.msra.mxu0 0.0
    %376 = vmatprep.subr.mxu0 0.0
    %377 = vmatpush1.msra.mxu0 0.0
    %378 = vmatprep.mubr.f32.mxu0 0.0
    %379 = vmatmul.mubr.f32.gmra.mrb[0].mxu0 %v312
    %v380 = vpop.f32.mrb[0].mxu0
    %v381 = vadd.f32 %v309, %v380
    %v382 = vpop.f32.mrb[0].mxu0
    %383 = vdwg.mxu0
    %v384 = vmul.f32 %v297, %v213
    %v385 = vmul.f32 %v384, 0.35355338
    %v386 = vsel %vm142, %v385, -inf
    %v387 = vrot.slane %v386, 4
    %v388 = vmax.f32 %v386, %v387
    %v389 = vrot.slane %v388, 2
    %v390 = vmax.f32 %v388, %v389
    %v391 = vrot.slane %v390, 1
    %v392 = vmax.f32 %v390, %v391
    %v393 = vsub.f32 %v385, %v392
    %v394 = vmul.f32 %v393, 1.442695
    %v395 = vpow.pop %v394
    %v396 = vsel %vm142, %v395, 0.0
    %v397 = vrot.slane %v396, 4
    %v398 = vadd.f32 %v396, %v397
    %v399 = vrot.slane %v398, 2
    %v400 = vadd.f32 %v398, %v399
    %v401 = vrot.slane %v400, 1
    %v402 = vadd.f32 %v400, %v401
    %v403 = vrcp.pop %v402
    %v404 = vmul.f32 %v395, %v403
    %405 = vst.msk [vmem:[#allocation15] sm:$0xff] %vm142, %v404
    %v406 = vld [vmem:[#allocation13] sm:$0xff]
    %v407 = vld [vmem:[#allocation13 + $0x8] sm:$0xff]
    %v408 = vld [vmem:[#allocation13 + $0x10] sm:$0xff]
    %v409 = vld [vmem:[#allocation13 + $0x18] sm:$0xff]
    %v410 = vld [vmem:[#allocation13 + $0x20] sm:$0xff]
    %v411 = vld [vmem:[#allocation13 + $0x28] sm:$0xff]
    %v412 = vld [vmem:[#allocation13 + $0x30] sm:$0xff]
    %v413 = vld [vmem:[#allocation13 + $0x38] sm:$0xff]
    %v415 = vsel %vm142, %v404, 0
    %417 = vmatprep.subr.mxu0 %v407
    %418 = vmatpush1.msra.mxu0 %v406
    %419 = vmatprep.subr.mxu0 %v409
    %420 = vmatpush1.msra.mxu0 %v408
    %421 = vmatprep.subr.mxu0 %v411
    %422 = vmatpush1.msra.mxu0 %v410
    %423 = vmatprep.subr.mxu0 %v413
    %424 = vmatpush1.msra.mxu0 %v412
    %425 = vmatprep.subr.mxu0 0.0
    %426 = vmatpush1.msra.mxu0 0.0
    %427 = vmatprep.subr.mxu0 0.0
    %428 = vmatpush1.msra.mxu0 0.0
    %429 = vmatprep.subr.mxu0 0.0
    %430 = vmatpush1.msra.mxu0 0.0
    %431 = vmatprep.subr.mxu0 0.0
    %432 = vmatpush1.msra.mxu0 0.0
    %433 = vmatprep.subr.mxu0 0.0
    %434 = vmatpush1.msra.mxu0 0.0
    %435 = vmatprep.subr.mxu0 0.0
    %436 = vmatpush1.msra.mxu0 0.0
    %437 = vmatprep.subr.mxu0 0.0
    %438 = vmatpush1.msra.mxu0 0.0
    %439 = vmatprep.subr.mxu0 0.0
    %440 = vmatpush1.msra.mxu0 0.0
    %441 = vmatprep.subr.mxu0 0.0
    %442 = vmatpush1.msra.mxu0 0.0
    %443 = vmatprep.subr.mxu0 0.0
    %444 = vmatpush1.msra.mxu0 0.0
    %445 = vmatprep.subr.mxu0 0.0
    %446 = vmatpush1.msra.mxu0 0.0
    %447 = vmatprep.subr.mxu0 0.0
    %448 = vmatpush1.msra.mxu0 0.0
    %449 = vmatprep.subr.mxu0 0.0
    %450 = vmatpush1.msra.mxu0 0.0
    %451 = vmatprep.subr.mxu0 0.0
    %452 = vmatpush1.msra.mxu0 0.0
    %453 = vmatprep.subr.mxu0 0.0
    %454 = vmatpush1.msra.mxu0 0.0
    %455 = vmatprep.subr.mxu0 0.0
    %456 = vmatpush1.msra.mxu0 0.0
    %457 = vmatprep.subr.mxu0 0.0
    %458 = vmatpush1.msra.mxu0 0.0
    %459 = vmatprep.subr.mxu0 0.0
    %460 = vmatpush1.msra.mxu0 0.0
    %461 = vmatprep.subr.mxu0 0.0
    %462 = vmatpush1.msra.mxu0 0.0
    %463 = vmatprep.subr.mxu0 0.0
    %464 = vmatpush1.msra.mxu0 0.0
    %465 = vmatprep.subr.mxu0 0.0
    %466 = vmatpush1.msra.mxu0 0.0
    %467 = vmatprep.subr.mxu0 0.0
    %468 = vmatpush1.msra.mxu0 0.0
    %469 = vmatprep.subr.mxu0 0.0
    %470 = vmatpush1.msra.mxu0 0.0
    %471 = vmatprep.subr.mxu0 0.0
    %472 = vmatpush1.msra.mxu0 0.0
    %473 = vmatprep.subr.mxu0 0.0
    %474 = vmatpush1.msra.mxu0 0.0
    %475 = vmatprep.subr.mxu0 0.0
    %476 = vmatpush1.msra.mxu0 0.0
    %477 = vmatprep.subr.mxu0 0.0
    %478 = vmatpush1.msra.mxu0 0.0
    %479 = vmatprep.subr.mxu0 0.0
    %480 = vmatpush1.msra.mxu0 0.0
    %481 = vmatprep.mubr.f32.mxu0 0.0
    %482 = vmatmul.mubr.f32.gmra.mrb[0].mxu0 %v415
    %v483 = vpop.f32.mrb[0].mxu0
    %v484 = vadd.f32 0.0, %v483
    %v485 = vpop.f32.mrb[0].mxu0
    %v486 = vadd.f32 0.0, %v485
    %487 = vdwg.mxu0
    %v488 = vlaneseq
    %v489 = vshrl.u32 %v488, 7
    %v490 = vsub.s32 0, %v489
    %v491 = vrot.slane %v381, %v490
    %v492 = vmul.f32 %v484, %v491
    %v493 = vlaneseq
    %v494 = vshrl.u32 %v493, 7
    %v495 = vsub.s32 1, %v494
    %v496 = vrot.slane %v381, %v495
    %498 = vrot.lane.b32.xlu0 %v496, 32
    %v499 = vpop.permute.xlu0 %498
    %v501 = vmul.f32 %v484, %v499
    %503 = vrot.lane.b32.xlu0 %v501, 96
    %v504 = vpop.permute.xlu0 %503
    %v506 = vadd.f32 %v492, %v504
    %v507 = vlaneseq
    %v508 = vshrl.u32 %v507, 7
    %v509 = vsub.s32 2, %v508
    %v510 = vrot.slane %v381, %v509
    %512 = vrot.lane.b32.xlu0 %v510, 64
    %v513 = vpop.permute.xlu0 %512
    %v515 = vmul.f32 %v484, %v513
    %517 = vrot.lane.b32.xlu0 %v515, 64
    %v518 = vpop.permute.xlu0 %517
    %v520 = vadd.f32 %v506, %v518
    %v521 = vlaneseq
    %v522 = vshrl.u32 %v521, 7
    %v523 = vsub.s32 3, %v522
    %v524 = vrot.slane %v381, %v523
    %526 = vrot.lane.b32.xlu0 %v524, 96
    %v527 = vpop.permute.xlu0 %526
    %v529 = vmul.f32 %v484, %v527
    %531 = vrot.lane.b32.xlu0 %v529, 32
    %v532 = vpop.permute.xlu0 %531
    %v534 = vadd.f32 %v520, %v532
    %v535 = vlaneseq
    %v536 = vshrl.u32 %v535, 7
    %v537 = vsub.s32 4, %v536
    %v538 = vrot.slane %v381, %v537
    %v539 = vmul.f32 %v486, %v538
    %v540 = vadd.f32 %v534, %v539
    %v541 = vlaneseq
    %v542 = vshrl.u32 %v541, 7
    %v543 = vsub.s32 5, %v542
    %v544 = vrot.slane %v381, %v543
    %546 = vrot.lane.b32.xlu0 %v544, 32
    %v547 = vpop.permute.xlu0 %546
    %v549 = vmul.f32 %v486, %v547
    %551 = vrot.lane.b32.xlu0 %v549, 96
    %v552 = vpop.permute.xlu0 %551
    %v554 = vadd.f32 %v540, %v552
    %v555 = vlaneseq
    %v556 = vshrl.u32 %v555, 7
    %v557 = vsub.s32 6, %v556
    %v558 = vrot.slane %v381, %v557
    %560 = vrot.lane.b32.xlu0 %v558, 64
    %v561 = vpop.permute.xlu0 %560
    %v563 = vmul.f32 %v486, %v561
    %565 = vrot.lane.b32.xlu0 %v563, 64
    %v566 = vpop.permute.xlu0 %565
    %v568 = vadd.f32 %v554, %v566
    %v569 = vlaneseq
    %v570 = vshrl.u32 %v569, 7
    %v571 = vsub.s32 7, %v570
    %v572 = vrot.slane %v381, %v571
    %574 = vrot.lane.b32.xlu0 %v572, 96
    %v575 = vpop.permute.xlu0 %574
    %v577 = vmul.f32 %v486, %v575
    %579 = vrot.lane.b32.xlu0 %v577, 32
    %v580 = vpop.permute.xlu0 %579
    %v582 = vadd.f32 %v568, %v580
    %583 = vst.msk [vmem:[#allocation14] sm:$0xff] %vm142, %v582
    // Predicated region
    $region70: #{tpu_custom_call.1} parent=1 // pred_check
      _
    $region71: #{tpu_custom_call.1} parent=1 // pred_check_branch
      %585 = sbr.rel (0) target = $region73
    $region72: #{tpu_custom_call.1} parent=1 // pred_region
      %s587 = ssub.s32 128, 128
      %588 = vsyncadd [#allocation4], %s587
      %s590 = sshll.u32 [#allocation14], 4
      %s591 = int_to_ptr.vmem [resolvable:$true] %s590
      %593 = dma.vmem_to_hbm [thread:$0]  %s591, 128, %s10, [#allocation4]
    $region73: #{tpu_custom_call.1} parent=1 // pred_fallthru
      _
    // Predicated region
    $region74: #{tpu_custom_call.1} parent=1 // pred_check
      _
    $region75: #{tpu_custom_call.1} parent=1 // pred_check_branch
      %595 = sbr.rel (0) target = $region77
    $region76: #{tpu_custom_call.1} parent=1 // pred_region
      %s597 = ssub.s32 128, 128
      %598 = vsyncadd [#allocation16], %s597
      %s600 = sshll.u32 [#allocation15], 4
      %s601 = int_to_ptr.vmem [resolvable:$true] %s600
      %603 = dma.vmem_to_hbm [thread:$0]  %s601, 128, %s11, [#allocation16]
    $region77: #{tpu_custom_call.1} parent=1 // pred_fallthru
      _
    // Predicated region
    $region78: #{tpu_custom_call.1} parent=1 // pred_check
      _
    $region79: #{tpu_custom_call.1} parent=1 // pred_check_branch
      %605 = sbr.rel (0) target = $region81
    $region80: #{tpu_custom_call.1} parent=1 // pred_region
      %606 = dma.done [#allocation4], 128
    $region81: #{tpu_custom_call.1} parent=1 // pred_fallthru
      _
    // Predicated region
    $region82: #{tpu_custom_call.1} parent=1 // pred_check
      _
    $region83: #{tpu_custom_call.1} parent=1 // pred_check_branch
      %608 = sbr.rel (0) target = $region85
    $region84: #{tpu_custom_call.1} parent=1 // pred_region
      %609 = dma.done [#allocation16], 128
    $region85: #{tpu_custom_call.1} parent=1 // pred_fallthru
      _
    %610 = vsyncpa [#allocation3], 1
    %611 = vsyncpa [#allocation6], 1
    %612 = vsyncpa [#allocation9], 1
    %613 = vsyncpa [#allocation12], 1
    %614 = vsyncpa [#allocation4], 1
    %615 = vsyncpa [#allocation16], 1

</llo_original>
